<compile_context>
chip_gen: v7x
topology: tpu7x:2x2x1
jax: 0.10.0
libtpu: 0.0.40
codegen_flags: <defaults>
</compile_context>

<pallas_src>
import functools

import jax
import jax.numpy as jnp
from jax.experimental import pallas as pl
from jax.experimental.pallas import tpu as pltpu

LEAKY_SLOPE = 0.2


def _leaky(y, slope):
    return jnp.where(y > 0, y, slope * y)


# ----------------------------------------------------------------------------
# Hardware-aware tile selection for layer 1.
# ----------------------------------------------------------------------------
def _vmem_capacity_bytes():
    try:
        return int(pltpu.get_tpu_info().vmem_capacity_bytes)
    except Exception:
        return 64 * 1024 * 1024  # conservative default (v7x per-TC VMEM)


def _pick_tile(dim, target):
    """Largest multiple of 128 <= target that divides dim (or dim itself)."""
    if dim <= target:
        return dim
    t = (target // 128) * 128
    while t >= 128:
        if dim % t == 0:
            return t
        t -= 128
    return dim


def _pick_tm(batch):
    """Batch tile: full batch when small, else a multiple-of-8 divisor."""
    if batch <= 256:
        return batch
    for tm in (256, 128, 64, 32, 16, 8):
        if batch % tm == 0:
            return tm
    return batch


def _layer1_tile_targets(vmem_cap):
    if vmem_cap >= 100 * 1024 * 1024:   # v5e / v6e: 128 MiB physical VMEM
        return 12288, 1024              # 24 MiB bf16 weight tile, ~6 steps
    return 4096, 1024                   # v7x: 64 MiB per TensorCore


# ----------------------------------------------------------------------------
# Layer 1: tiled  y = LeakyReLU(x @ W1 + b1)  over grid (M, N, K), K innermost.
# ----------------------------------------------------------------------------
def _layer1_kernel(x_ref, w_ref, b_ref, o_ref, *, slope):
    k = pl.program_id(2)

    @pl.when(k == 0)
    def _():
        o_ref[...] = jnp.zeros_like(o_ref)

    # bf16 x and bf16 w go straight into the MXU; f32 accumulation directly
    # into the output block (VMEM-resident across the K axis).
    o_ref[...] += jnp.dot(x_ref[...], w_ref[...],
                          preferred_element_type=jnp.float32)

    @pl.when(k == pl.num_programs(2) - 1)
    def _():
        o_ref[...] = _leaky(o_ref[...] + b_ref[...], slope)


def pallas_layer1(x, w1, b1, *, tk=None, tn=None):
    B, K = x.shape
    Kw, N = w1.shape
    assert K == Kw, (K, Kw)

    vmem_cap = _vmem_capacity_bytes()
    tk_target, tn_target = _layer1_tile_targets(vmem_cap)
    tk = _pick_tile(K, tk_target) if tk is None else tk
    tn = _pick_tile(N, tn_target) if tn is None else tn
    tm = _pick_tm(B)
    assert K % tk == 0 and N % tn == 0 and B % tm == 0, (K, tk, N, tn, B, tm)
    grid = (B // tm, N // tn, K // tk)  # reduction axis (K) innermost

    # VMEM budget: double-buffered bf16 weight & x tiles + f32 output + bias,
    # with headroom; floored at 32 MiB, capped below physical capacity.
    need = (2 * tk * tn * 2          # weight tiles (bf16, double-buffered)
            + 2 * tm * tk * 2        # x tiles (bf16, double-buffered)
            + 2 * tm * tn * 4        # f32 output block
            + 2 * 8 * tn * 4)        # bias block (sublane-padded)
    vmem_limit = max(32 << 20, int(need * 1.3) + (4 << 20))
    vmem_limit = min(vmem_limit, int(vmem_cap * 0.9))

    kernel = functools.partial(_layer1_kernel, slope=LEAKY_SLOPE)
    cost = pl.CostEstimate(
        flops=2 * B * K * N,
        transcendentals=0,
        bytes_accessed=int(
            (B // tm) * K * N * w1.dtype.itemsize    # weights streamed per M tile
            + (N // tn) * B * K * x.dtype.itemsize   # x re-streamed per N tile
            + B * N * 4                              # f32 output
            + N * 4),                                # bias
    )
    return pl.pallas_call(
        kernel,
        out_shape=jax.ShapeDtypeStruct((B, N), jnp.float32),
        grid_spec=pltpu.PrefetchScalarGridSpec(
            num_scalar_prefetch=0,
            grid=grid,
            in_specs=[
                pl.BlockSpec((tm, tk), lambda m, n, k: (m, k)),   # bf16 x
                pl.BlockSpec((tk, tn), lambda m, n, k: (k, n)),   # bf16 W1
                pl.BlockSpec((1, tn), lambda m, n, k: (0, n)),    # f32 bias
            ],
            out_specs=pl.BlockSpec((tm, tn), lambda m, n, k: (m, n)),
        ),
        compiler_params=pltpu.CompilerParams(
            dimension_semantics=("parallel", "parallel", "arbitrary"),
            vmem_limit_bytes=vmem_limit,
        ),
        cost_estimate=cost,
    )(x, w1, b1)


# ----------------------------------------------------------------------------
# Layers 2-4 fused: small weights fully VMEM-resident (bf16, never upcast);
# final Dout=1 layer on the VPU as a reduction, output lane-padded to 128.
# ----------------------------------------------------------------------------
def _tail_kernel(h1_ref, w2_ref, b2_ref, w3_ref, b3_ref, w4_ref, b4_ref,
                 o_ref, *, slope):
    h1 = h1_ref[...].astype(jnp.bfloat16)
    h2 = jnp.dot(h1, w2_ref[...],
                 preferred_element_type=jnp.float32) + b2_ref[...]
    h2 = _leaky(h2, slope)
    h3 = jnp.dot(h2.astype(jnp.bfloat16), w3_ref[...],
                 preferred_element_type=jnp.float32) + b3_ref[...]
    h3 = _leaky(h3, slope)
    # Final layer (Dout=1): dot-as-reduce on the VPU/XLU instead of a 1-wide
    # MXU matmul; broadcast into a lane-dense 128-wide output block.
    w4 = w4_ref[...].astype(jnp.float32)                          # (1, N3)
    y = jnp.sum(h3 * w4, axis=-1, keepdims=True) + b4_ref[0, 0]   # (B, 1)
    o_ref[...] = jnp.broadcast_to(y, o_ref.shape).astype(o_ref.dtype)


def pallas_tail(h1, w2, b2, w3, b3, w4, b4, *, out_pad=128):
    B, N1 = h1.shape
    N2 = w2.shape[1]
    N3 = w3.shape[1]
    kernel = functools.partial(_tail_kernel, slope=LEAKY_SLOPE)
    cost = pl.CostEstimate(
        flops=2 * B * (N1 * N2 + N2 * N3 + N3),
        transcendentals=0,
        bytes_accessed=int((N1 * N2 + N2 * N3 + N3) * 2
                           + B * N1 * 4 + B * out_pad * 4),
    )

    def full(shape):
        return pl.BlockSpec(shape, lambda: (0,) * len(shape))

    out = pl.pallas_call(
        kernel,
        out_shape=jax.ShapeDtypeStruct((B, out_pad), jnp.float32),
        in_specs=[
            full((B, N1)),                  # h1 (f32)
            full((N1, N2)), full((1, N2)),  # w2 (bf16), b2 (f32)
            full((N2, N3)), full((1, N3)),  # w3 (bf16), b3 (f32)
            full((1, N3)),                  # w4 row (bf16)
            pl.BlockSpec(memory_space=pltpu.MemorySpace.SMEM),  # b4 scalar
        ],
        out_specs=full((B, out_pad)),
        cost_estimate=cost,
    )(h1, w2, b2, w3, b3, w4, b4)
    return out[:, :1]


# ----------------------------------------------------------------------------
# Params / forward / reference
# ----------------------------------------------------------------------------
def init_discriminator_params(key, im_dim, hidden_dim):
    """Synthetic params matching the module's layer shapes (weights bf16,
    biases f32)."""
    dims = [im_dim, hidden_dim * 4, hidden_dim * 2, hidden_dim, 1]
    params = []
    for i in range(4):
        kw, kb, key = jax.random.split(key, 3)
        fan_in = dims[i]
        bound = 1.0 / float(fan_in) ** 0.5
        w = jax.random.uniform(kw, (dims[i], dims[i + 1]), jnp.float32,
                               -bound, bound)
        b = jax.random.uniform(kb, (1, dims[i + 1]), jnp.float32,
                               -bound, bound)
        if i == 3:
            w = w.T  # final layer stored lane-dense as (1, hidden)
        params.extend([w.astype(jnp.bfloat16), b])
    return tuple(params)


def discriminator_forward(params, image, *, layer1_tiles=None):
    """image: (B, im_dim) flattened.  Returns (B, 1) logits."""
    w1, b1, w2, b2, w3, b3, w4, b4 = params
    x = image.astype(jnp.bfloat16)  # bf16 LHS for the MXU; halves x traffic
    tk, tn = (None, None) if layer1_tiles is None else layer1_tiles
    h1 = pallas_layer1(x, w1, b1, tk=tk, tn=tn)
    return pallas_tail(h1, w2, b2, w3, b3, w4, b4)


def reference_forward(params, image):
    """Pure-JAX reference using the same bf16-operand / f32-accumulate math."""
    w1, b1, w2, b2, w3, b3, w4, b4 = params
    x = image.astype(jnp.bfloat16)
    h = _leaky(jnp.dot(x, w1, preferred_element_type=jnp.float32) + b1,
               LEAKY_SLOPE)
    h = _leaky(jnp.dot(h.astype(jnp.bfloat16), w2,
                       preferred_element_type=jnp.float32) + b2, LEAKY_SLOPE)
    h = _leaky(jnp.dot(h.astype(jnp.bfloat16), w3,
                       preferred_element_type=jnp.float32) + b3, LEAKY_SLOPE)
    return jnp.sum(h * w4.astype(jnp.float32), axis=-1, keepdims=True) + b4


if __name__ == "__main__":
    # Small shapes consistent with the module (real module: im_dim=4*96*96,
    # hidden_dim=512; here scaled down).
    B = 8
    IM_DIM = 512
    HIDDEN = 64

    key = jax.random.PRNGKey(0)
    k_params, k_x = jax.random.split(key)

    params = init_discriminator_params(k_params, IM_DIM, HIDDEN)
    x = jax.random.normal(k_x, (B, IM_DIM), jnp.float32)

    # Small layer-1 tiles so the test exercises the (M, N, K) grid / pipeline.
    fwd = jax.jit(functools.partial(discriminator_forward,
                                    layer1_tiles=(128, 128)))
    out = jax.block_until_ready(fwd(params, x))

    ref = reference_forward(params, x)
    assert out.shape == (B, 1), out.shape
    err = float(jnp.max(jnp.abs(out - ref)))
    assert jnp.allclose(out, ref, atol=1e-2, rtol=1e-2), (
        f"mismatch vs reference, max abs err = {err}")

    print("KERNEL_OK")
</pallas_src>

<mosaic_0001>
module attributes {stable_mosaic.version = 11 : i64} {
  func.func @_layer1_kernel(%arg0: i32, %arg1: i32, %arg2: i32, %arg3: memref<8x128xbf16, #tpu.memory_space<vmem>>, %arg4: memref<128x128xbf16, #tpu.memory_space<vmem>>, %arg5: memref<1x128xf32, #tpu.memory_space<vmem>>, %arg6: memref<8x128xf32, #tpu.memory_space<vmem>>) attributes {dimension_semantics = [#tpu.dimension_semantics<parallel>, #tpu.dimension_semantics<parallel>, #tpu.dimension_semantics<arbitrary>], iteration_bounds = array<i64: 1, 2, 4>, scalar_prefetch = 0 : i64, scratch_operands = 0 : i64, tpu.core_type = #tpu.core_type<tc>, window_params = [{transform_indices = @transform_0, window_bounds = array<i64: 8, 128>}, {transform_indices = @transform_1, window_bounds = array<i64: 128, 128>}, {transform_indices = @transform_2, window_bounds = array<i64: 1, 128>}, {transform_indices = @transform_3, window_bounds = array<i64: 8, 128>}]} {
    %c0_i32 = arith.constant 0 : i32
    %0 = arith.cmpi eq, %arg2, %c0_i32 : i32
    %1 = arith.extui %0 : i1 to i32
    %c0_i32_0 = arith.constant 0 : i32
    %2 = arith.cmpi ne, %1, %c0_i32_0 : i32
    scf.if %2 {
      %cst_9 = arith.constant 0.000000e+00 : f32
      %12 = vector.broadcast %cst_9 : f32 to vector<8x128xf32>
      %c0_10 = arith.constant 0 : index
      %c0_11 = arith.constant 0 : index
      %13 = vector.load %arg6[%c0_10, %c0_11] : memref<8x128xf32, #tpu.memory_space<vmem>>, vector<8x128xf32>
      tpu.vector_store %arg6[%c0_10, %c0_11], %12 {strides = array<i32>} : memref<8x128xf32, #tpu.memory_space<vmem>>, vector<8x128xf32>,
    } else {
    }
    %c0 = arith.constant 0 : index
    %c0_1 = arith.constant 0 : index
    %3 = vector.load %arg6[%c0, %c0_1] : memref<8x128xf32, #tpu.memory_space<vmem>>, vector<8x128xf32>
    %c0_2 = arith.constant 0 : index
    %c0_3 = arith.constant 0 : index
    %4 = vector.load %arg3[%c0_2, %c0_3] : memref<8x128xbf16, #tpu.memory_space<vmem>>, vector<8x128xbf16>
    %c0_4 = arith.constant 0 : index
    %c0_5 = arith.constant 0 : index
    %5 = vector.load %arg4[%c0_4, %c0_5] : memref<128x128xbf16, #tpu.memory_space<vmem>>, vector<128x128xbf16>
    %cst = arith.constant dense<0.000000e+00> : vector<8x128xf32>
    %6 = tpu.matmul %4, %5, %cst {dimension_numbers = #tpu.dot_dimension_numbers<[1], [0], [0], [1], [0, 0, 1, 1], [], []>} : vector<8x128xbf16>, vector<128x128xbf16>, vector<8x128xf32> -> vector<8x128xf32>
    %7 = arith.addf %3, %6 : vector<8x128xf32>
    %c0_6 = arith.constant 0 : index
    %c0_7 = arith.constant 0 : index
    %8 = vector.load %arg6[%c0_6, %c0_7] : memref<8x128xf32, #tpu.memory_space<vmem>>, vector<8x128xf32>
    tpu.vector_store %arg6[%c0_6, %c0_7], %7 {strides = array<i32>} : memref<8x128xf32, #tpu.memory_space<vmem>>, vector<8x128xf32>,
    %c3_i32 = arith.constant 3 : i32
    %9 = arith.cmpi eq, %arg2, %c3_i32 : i32
    %10 = arith.extui %9 : i1 to i32
    %c0_i32_8 = arith.constant 0 : i32
    %11 = arith.cmpi ne, %10, %c0_i32_8 : i32
    scf.if %11 {
      %c0_9 = arith.constant 0 : index
      %c0_10 = arith.constant 0 : index
      %12 = vector.load %arg6[%c0_9, %c0_10] : memref<8x128xf32, #tpu.memory_space<vmem>>, vector<8x128xf32>
      %c0_11 = arith.constant 0 : index
      %c0_12 = arith.constant 0 : index
      %13 = vector.load %arg5[%c0_11, %c0_12] : memref<1x128xf32, #tpu.memory_space<vmem>>, vector<1x128xf32>
      %14 = vector.broadcast %13 : vector<1x128xf32> to vector<8x128xf32>
      %15 = arith.addf %12, %14 : vector<8x128xf32>
      %cst_13 = arith.constant 0.000000e+00 : f32
      %16 = vector.broadcast %cst_13 : f32 to vector<8x128xf32>
      %17 = arith.cmpf ogt, %15, %16 : vector<8x128xf32>
      %cst_14 = arith.constant 2.000000e-01 : f32
      %18 = vector.broadcast %cst_14 : f32 to vector<8x128xf32>
      %19 = arith.mulf %18, %15 : vector<8x128xf32>
      %20 = arith.select %17, %15, %19 : vector<8x128xi1>, vector<8x128xf32>
      %c0_15 = arith.constant 0 : index
      %c0_16 = arith.constant 0 : index
      %21 = vector.load %arg6[%c0_15, %c0_16] : memref<8x128xf32, #tpu.memory_space<vmem>>, vector<8x128xf32>
      tpu.vector_store %arg6[%c0_15, %c0_16], %20 {strides = array<i32>} : memref<8x128xf32, #tpu.memory_space<vmem>>, vector<8x128xf32>,
    } else {
    }
    return
  }
  func.func @transform_0(%arg0: i32, %arg1: i32, %arg2: i32) -> (i32, i32) {
    %c0_i32 = arith.constant 0 : i32
    return %arg0, %arg2 : i32, i32
  }
  func.func @transform_1(%arg0: i32, %arg1: i32, %arg2: i32) -> (i32, i32) {
    %c0_i32 = arith.constant 0 : i32
    return %arg2, %arg1 : i32, i32
  }
  func.func @transform_2(%arg0: i32, %arg1: i32, %arg2: i32) -> (i32, i32) {
    %c0_i32 = arith.constant 0 : i32
    %c0_i32_0 = arith.constant 0 : i32
    return %c0_i32, %arg1 : i32, i32
  }
  func.func @transform_3(%arg0: i32, %arg1: i32, %arg2: i32) -> (i32, i32) {
    %c0_i32 = arith.constant 0 : i32
    return %arg0, %arg1 : i32, i32
  }
}

module attributes {stable_mosaic.version = 11 : i64} {
  func.func @_tail_kernel(%arg0: memref<8x256xf32, #tpu.memory_space<vmem>>, %arg1: memref<256x128xbf16, #tpu.memory_space<vmem>>, %arg2: memref<1x128xf32, #tpu.memory_space<vmem>>, %arg3: memref<128x64xbf16, #tpu.memory_space<vmem>>, %arg4: memref<1x64xf32, #tpu.memory_space<vmem>>, %arg5: memref<1x64xbf16, #tpu.memory_space<vmem>>, %arg6: memref<1x1xf32, #tpu.memory_space<smem>>, %arg7: memref<8x128xf32, #tpu.memory_space<vmem>>) attributes {dimension_semantics = [], scalar_prefetch = 0 : i64, scratch_operands = 0 : i64, tpu.core_type = #tpu.core_type<tc>} {
    %c0 = arith.constant 0 : index
    %c0_0 = arith.constant 0 : index
    %0 = vector.load %arg0[%c0, %c0_0] : memref<8x256xf32, #tpu.memory_space<vmem>>, vector<8x256xf32>
    %1 = arith.truncf %0 : vector<8x256xf32> to vector<8x256xbf16>
    %c0_1 = arith.constant 0 : index
    %c0_2 = arith.constant 0 : index
    %2 = vector.load %arg1[%c0_1, %c0_2] : memref<256x128xbf16, #tpu.memory_space<vmem>>, vector<256x128xbf16>
    %cst = arith.constant dense<0.000000e+00> : vector<8x128xf32>
    %3 = tpu.matmul %1, %2, %cst {dimension_numbers = #tpu.dot_dimension_numbers<[1], [0], [0], [1], [0, 0, 1, 1], [], []>} : vector<8x256xbf16>, vector<256x128xbf16>, vector<8x128xf32> -> vector<8x128xf32>
    %c0_3 = arith.constant 0 : index
    %c0_4 = arith.constant 0 : index
    %4 = vector.load %arg2[%c0_3, %c0_4] : memref<1x128xf32, #tpu.memory_space<vmem>>, vector<1x128xf32>
    %5 = vector.broadcast %4 : vector<1x128xf32> to vector<8x128xf32>
    %6 = arith.addf %3, %5 : vector<8x128xf32>
    %cst_5 = arith.constant 0.000000e+00 : f32
    %7 = vector.broadcast %cst_5 : f32 to vector<8x128xf32>
    %8 = arith.cmpf ogt, %6, %7 : vector<8x128xf32>
    %cst_6 = arith.constant 2.000000e-01 : f32
    %9 = vector.broadcast %cst_6 : f32 to vector<8x128xf32>
    %10 = arith.mulf %9, %6 : vector<8x128xf32>
    %11 = arith.select %8, %6, %10 : vector<8x128xi1>, vector<8x128xf32>
    %12 = arith.truncf %11 : vector<8x128xf32> to vector<8x128xbf16>
    %c0_7 = arith.constant 0 : index
    %c0_8 = arith.constant 0 : index
    %13 = vector.load %arg3[%c0_7, %c0_8] : memref<128x64xbf16, #tpu.memory_space<vmem>>, vector<128x64xbf16>
    %cst_9 = arith.constant dense<0.000000e+00> : vector<8x64xf32>
    %14 = tpu.matmul %12, %13, %cst_9 {dimension_numbers = #tpu.dot_dimension_numbers<[1], [0], [0], [1], [0, 0, 1, 1], [], []>} : vector<8x128xbf16>, vector<128x64xbf16>, vector<8x64xf32> -> vector<8x64xf32>
    %c0_10 = arith.constant 0 : index
    %c0_11 = arith.constant 0 : index
    %15 = vector.load %arg4[%c0_10, %c0_11] : memref<1x64xf32, #tpu.memory_space<vmem>>, vector<1x64xf32>
    %16 = vector.broadcast %15 : vector<1x64xf32> to vector<8x64xf32>
    %17 = arith.addf %14, %16 : vector<8x64xf32>
    %cst_12 = arith.constant 0.000000e+00 : f32
    %18 = vector.broadcast %cst_12 : f32 to vector<8x64xf32>
    %19 = arith.cmpf ogt, %17, %18 : vector<8x64xf32>
    %cst_13 = arith.constant 2.000000e-01 : f32
    %20 = vector.broadcast %cst_13 : f32 to vector<8x64xf32>
    %21 = arith.mulf %20, %17 : vector<8x64xf32>
    %22 = arith.select %19, %17, %21 : vector<8x64xi1>, vector<8x64xf32>
    %c0_14 = arith.constant 0 : index
    %c0_15 = arith.constant 0 : index
    %23 = vector.load %arg5[%c0_14, %c0_15] : memref<1x64xbf16, #tpu.memory_space<vmem>>, vector<1x64xbf16>
    %24 = arith.extf %23 : vector<1x64xbf16> to vector<1x64xf32>
    %25 = vector.broadcast %24 : vector<1x64xf32> to vector<8x64xf32>
    %26 = arith.mulf %22, %25 : vector<8x64xf32>
    %cst_16 = arith.constant dense<0.000000e+00> : vector<8xf32>
    %27 = vector.multi_reduction <add>, %26, %cst_16 [1] : vector<8x64xf32> to vector<8xf32>
    %28 = vector.shape_cast %27 : vector<8xf32> to vector<8x1xf32>
    %c0_17 = arith.constant 0 : index
    %c0_18 = arith.constant 0 : index
    %29 = memref.load %arg6[%c0_17, %c0_18] : memref<1x1xf32, #tpu.memory_space<smem>>
    %30 = vector.broadcast %29 : f32 to vector<8x1xf32>
    %31 = arith.addf %28, %30 : vector<8x1xf32>
    %32 = vector.shape_cast %31 : vector<8x1xf32> to vector<8x1xf32>
    %33 = vector.broadcast %32 : vector<8x1xf32> to vector<8x128xf32>
    %c0_19 = arith.constant 0 : index
    %c0_20 = arith.constant 0 : index
    %34 = vector.load %arg7[%c0_19, %c0_20] : memref<8x128xf32, #tpu.memory_space<vmem>>, vector<8x128xf32>
    tpu.vector_store %arg7[%c0_19, %c0_20], %33 {strides = array<i32>} : memref<8x128xf32, #tpu.memory_space<vmem>>, vector<8x128xf32>,
    return
  }
}

</mosaic_0001>

<llo_original>
// kernel: discriminator_forward.2
$region0: #{discriminator_forward.2}
  #allocation0 [shape = 'u32[]', space=smem, size = 0x4, offset = 0x4, fixed_abs, tag = 'smem constant byte address 0x4 - core index']
  #allocation1 [shape = 'u32[144,128]{1,0:T(1,128)}', space=vmem, size = 0x12000, scoped, tag = 'internal scratch']
  %s0 = inlined_call_operand.vmem [shape: bf16[8,512], index: 0, kind: input, shape index: {}]
  %s1 = inlined_call_operand.hbm [shape: bf16[512,256], index: 1, kind: input, shape index: {}]
  %s2 = inlined_call_operand.vmem [shape: f32[1,256], index: 2, kind: input, shape index: {}]
  %s3 = inlined_call_operand.vmem [shape: f32[8,256], index: 3, kind: output, shape index: {}]
  %s4 = sld [smem:[#allocation0]]
  $region57: #{discriminator_forward.2} parent=0
    _
  %s6 = ssub.s32 1, %s4
  %s7 = scalar_select 0, %s6, %s4
  $region1: #{discriminator_forward.2} parent=0
    #allocation2 [shape = 'u8[65536]{0}', space=vmem, size = 0x10000, scoped, tag = 'input window, operand 1']
    #allocation3 [shape = 's32[2]{0}', space=sflag, size = 0x8, scoped, tag = 'scoped memory for discriminator_forward.2']
    %8 = vsyncpa [#allocation3], 0
    %s9 = scalar_lea.sflag [#allocation3], 1
    %10 = vsyncpa %s9, 0
    loop: start=0, step=1, limit=10
    $region2: #{discriminator_forward.2} parent=1 // loop_pre_header
      _
    $region3: #{discriminator_forward.2} parent=1 // loop_header
      %s12 = sphi 0, %s16
      %p13 = scmp.ge.s32.totalorder %s12, 10
      %s19 = sphi 0, %s38
      %s20 = sphi 0, %s34
      %s21 = sphi 0, %s30
      %s22 = sphi 0, %s19
      %s23 = sphi 0, %s20
      %s24 = sphi 0, %s21
      %s25 = sphi 0, %s22
      %s26 = sphi 0, %s23
      %s27 = sphi 0, %s24
      %s43 = sphi 0, %s45
      %s46 = sphi 0, %s43
      %s47 = sphi 0, %s46
      %s63 = sphi 0, %s47
      %s71 = sphi 0, %s73
      %s74 = sphi 0, %s71
      %s75 = sphi 0, %s74
      %s91 = sphi 0, %s75
      %s97 = sphi 0, %s99
      %s100 = sphi 0, %s97
      %s101 = sphi 0, %s100
      %s117 = sphi 0, %s101
      %s125 = sphi 0, %s127
      %s128 = sphi 0, %s125
      %s129 = sphi 0, %s128
      %s145 = sphi 0, %s129
    $region4: #{discriminator_forward.2} parent=1 // loop_header_branch
      %15 = sbr.rel (%p13) target = $region8
    $region5: #{discriminator_forward.2} parent=1 // loop_body
      %s17 = ssub.s32 %s12, 1
      %s18 = ssub.s32 %s12, 2
      %s28 = sadd.s32 1, %s21
      %p29 = scmp.ge.s32.totalorder %s28, 4
      %s30 = scalar_select %p29, 0, %s28
      %s31 = sadd.s32 1, %s20
      %s32 = scalar_select %p29, %s31, %s20
      %p33 = scmp.ge.s32.totalorder %s32, 2
      %s34 = scalar_select %p33, 0, %s32
      %s35 = sadd.s32 1, %s19
      %s36 = scalar_select %p33, %s35, %s19
      %p37 = scmp.ge.s32.totalorder %s36, 1
      %s38 = scalar_select %p37, 0, %s36
      %s39 = ssub.s32 %s19, %s38
      %s40 = ssub.s32 %s21, %s30
      %s41 = sor.u32 %s39, %s40
      %p42 = scmp.eq.s32.totalorder %s41, 0
      %s44 = sadd.s32 %s43, 1
      %s45 = scalar_select %p42, %s43, %s44
      %p48 = pneg %p42
      %p49 = scmp.eq.s32.totalorder %s12, 7
      %p50 = por %p48, %p49
      %p51 = scmp.ne.s32.totalorder %s43, %s46
      %p52 = scmp.eq.s32.totalorder %s12, 0
      %p53 = por %p51, %p52
      %p54 = scmp.ne.s32.totalorder %s43, %s46
      %p55 = scmp.eq.s32.totalorder %s17, 7
      %p56 = por %p54, %p55
      %p57 = scmp.ne.s32.totalorder %s46, %s47
      %p58 = scmp.eq.s32.totalorder %s17, 0
      %p59 = por %p57, %p58
      %p60 = scmp.ne.s32.totalorder %s46, %s47
      %p61 = scmp.eq.s32.totalorder %s18, 7
      %p62 = por %p60, %p61
      %p64 = scmp.ne.s32.totalorder %s47, %s63
      %p65 = scmp.eq.s32.totalorder %s18, 0
      %p66 = por %p64, %p65
      %s67 = ssub.s32 %s21, %s30
      %s68 = ssub.s32 %s20, %s34
      %s69 = sor.u32 %s67, %s68
      %p70 = scmp.eq.s32.totalorder %s69, 0
      %s72 = sadd.s32 %s71, 1
      %s73 = scalar_select %p70, %s71, %s72
      %p76 = pneg %p70
      %p77 = scmp.eq.s32.totalorder %s12, 7
      %p78 = por %p76, %p77
      %p79 = scmp.ne.s32.totalorder %s71, %s74
      %p80 = scmp.eq.s32.totalorder %s12, 0
      %p81 = por %p79, %p80
      %p82 = scmp.ne.s32.totalorder %s71, %s74
      %p83 = scmp.eq.s32.totalorder %s17, 7
      %p84 = por %p82, %p83
      %p85 = scmp.ne.s32.totalorder %s74, %s75
      %p86 = scmp.eq.s32.totalorder %s17, 0
      %p87 = por %p85, %p86
      %p88 = scmp.ne.s32.totalorder %s74, %s75
      %p89 = scmp.eq.s32.totalorder %s18, 7
      %p90 = por %p88, %p89
      %p92 = scmp.ne.s32.totalorder %s75, %s91
      %p93 = scmp.eq.s32.totalorder %s18, 0
      %p94 = por %p92, %p93
      %s95 = ssub.s32 %s20, %s34
      %p96 = scmp.eq.s32.totalorder %s95, 0
      %s98 = sadd.s32 %s97, 1
      %s99 = scalar_select %p96, %s97, %s98
      %p102 = pneg %p96
      %p103 = scmp.eq.s32.totalorder %s12, 7
      %p104 = por %p102, %p103
      %p105 = scmp.ne.s32.totalorder %s97, %s100
      %p106 = scmp.eq.s32.totalorder %s12, 0
      %p107 = por %p105, %p106
      %p108 = scmp.ne.s32.totalorder %s97, %s100
      %p109 = scmp.eq.s32.totalorder %s17, 7
      %p110 = por %p108, %p109
      %p111 = scmp.ne.s32.totalorder %s100, %s101
      %p112 = scmp.eq.s32.totalorder %s17, 0
      %p113 = por %p111, %p112
      %p114 = scmp.ne.s32.totalorder %s100, %s101
      %p115 = scmp.eq.s32.totalorder %s18, 7
      %p116 = por %p114, %p115
      %p118 = scmp.ne.s32.totalorder %s101, %s117
      %p119 = scmp.eq.s32.totalorder %s18, 0
      %p120 = por %p118, %p119
      %s121 = ssub.s32 %s19, %s38
      %s122 = ssub.s32 %s20, %s34
      %s123 = sor.u32 %s121, %s122
      %p124 = scmp.eq.s32.totalorder %s123, 0
      %s126 = sadd.s32 %s125, 1
      %s127 = scalar_select %p124, %s125, %s126
      %p130 = pneg %p124
      %p131 = scmp.eq.s32.totalorder %s12, 7
      %p132 = por %p130, %p131
      %p133 = scmp.ne.s32.totalorder %s125, %s128
      %p134 = scmp.eq.s32.totalorder %s12, 0
      %p135 = por %p133, %p134
      %p136 = scmp.ne.s32.totalorder %s125, %s128
      %p137 = scmp.eq.s32.totalorder %s17, 7
      %p138 = por %p136, %p137
      %p139 = scmp.ne.s32.totalorder %s128, %s129
      %p140 = scmp.eq.s32.totalorder %s17, 0
      %p141 = por %p139, %p140
      %p142 = scmp.ne.s32.totalorder %s128, %s129
      %p143 = scmp.eq.s32.totalorder %s18, 7
      %p144 = por %p142, %p143
      %p146 = scmp.ne.s32.totalorder %s129, %s145
      %p147 = scmp.eq.s32.totalorder %s18, 0
      %p148 = por %p146, %p147
      %p149 = scmp.le.s32.totalorder 1, %s12
      %p150 = scmp.lt.s32.totalorder %s12, 9
      %p151 = pnand %p149, %p150
      %p152 = pneg %p151
      // Predicated region
      $region9: #{discriminator_forward.2} parent=5 // pred_check
        _
      $region10: #{discriminator_forward.2} parent=5 // pred_check_branch
        %154 = sbr.rel (%p151) target = $region12
      $region11: #{discriminator_forward.2} parent=5 // pred_region
        %s155 = ssub.s32 %s12, 1
      $region12: #{discriminator_forward.2} parent=5 // pred_fallthru
        _
      %p156 = scmp.lt.s32.totalorder %s12, 8
      // Predicated region
      $region13: #{discriminator_forward.2} parent=5 // pred_check
        %p157 = pneg %p156
      $region14: #{discriminator_forward.2} parent=5 // pred_check_branch
        %159 = sbr.rel (%p157) target = $region16
      $region15: #{discriminator_forward.2} parent=5 // pred_region
        // Predicated region
        $region17: #{discriminator_forward.2} parent=15 // pred_check
          %p160 = pneg %p53
        $region18: #{discriminator_forward.2} parent=15 // pred_check_branch
          %162 = sbr.rel (%p160) target = $region20
        $region19: #{discriminator_forward.2} parent=15 // pred_region
          %p163 = scmp.lt.s32.totalorder %s19, 0
          %s164 = scalar_select %p163, %s19, 0
          %p165 = scmp.lt.s32.totalorder %s21, 3
          %s166 = scalar_select %p165, %s21, 3
          %s167 = smul.addr %s164, 4
          %s168 = sadd.s32 %s166, %s167
          %s169 = smul.addr %s168, 4
          %s170 = scalar_lea.vmem %s0, %s169
        $region20: #{discriminator_forward.2} parent=15 // pred_fallthru
          _
        // Predicated region
        $region21: #{discriminator_forward.2} parent=15 // pred_check
          %p171 = pneg %p81
        $region22: #{discriminator_forward.2} parent=15 // pred_check_branch
          %173 = sbr.rel (%p171) target = $region24
        $region23: #{discriminator_forward.2} parent=15 // pred_region
          %s174 = sand.u32 %s71, 1
          %s175 = scalar_lea.sflag [#allocation3], %s174
          %s176 = sand.u32 %s71, 1
          %s177 = smul.addr %s176, 64
          %s178 = scalar_lea.vmem [#allocation2], %s177
          %s179 = smul.u32 16, %s21
          %s181 = ssub.s32 1024, 1024
          %182 = vsyncadd %s175, %s181
          %s183 = smul.addr %s179, 2
          %s184 = sadd.s32 %s20, %s183
          %s185 = smul.addr %s184, 64
          %s186 = scalar_lea.hbm %s1, %s185
          %s187 = sshll.u32 %s178, 4
          %s188 = int_to_ptr.vmem [resolvable:$true] %s187
          %193 = dma.hbm_to_vmem [thread:$0]  %s186, 1024, %s188, %s175, 128, 64, 4
        $region24: #{discriminator_forward.2} parent=15 // pred_fallthru
          _
        // Predicated region
        $region25: #{discriminator_forward.2} parent=15 // pred_check
          %p194 = pneg %p107
        $region26: #{discriminator_forward.2} parent=15 // pred_check_branch
          %196 = sbr.rel (%p194) target = $region28
        $region27: #{discriminator_forward.2} parent=15 // pred_region
          %p197 = scmp.lt.s32.totalorder %s20, 1
          %s198 = scalar_select %p197, %s20, 1
          %s199 = scalar_lea.vmem %s2, %s198
        $region28: #{discriminator_forward.2} parent=15 // pred_fallthru
          _
      $region16: #{discriminator_forward.2} parent=5 // pred_fallthru
        _
      %p200 = scmp.le.s32.totalorder 1, %s12
      %p201 = scmp.lt.s32.totalorder %s12, 9
      %p202 = pnand %p200, %p201
      %p203 = pneg %p202
      // Predicated region
      $region29: #{discriminator_forward.2} parent=5 // pred_check
        _
      $region30: #{discriminator_forward.2} parent=5 // pred_check_branch
        %205 = sbr.rel (%p202) target = $region32
      $region31: #{discriminator_forward.2} parent=5 // pred_region
        %s206 = ssub.s32 %s12, 1
        %s207 = sand.u32 %s74, 1
        %s208 = scalar_lea.sflag [#allocation3], %s207
        %s209 = sand.u32 %s74, 1
        %s210 = smul.addr %s209, 64
        %s211 = scalar_lea.vmem [#allocation2], %s210
        // Predicated region
        $region33: #{discriminator_forward.2} parent=31 // pred_check
          %p212 = pneg %p87
        $region34: #{discriminator_forward.2} parent=31 // pred_check_branch
          %214 = sbr.rel (%p212) target = $region36
        $region35: #{discriminator_forward.2} parent=31 // pred_region
          %215 = dma.done %s208, 1024
        $region36: #{discriminator_forward.2} parent=31 // pred_fallthru
          _
        %p216 = scmp.lt.s32.totalorder %s22, 0
        %s217 = scalar_select %p216, %s22, 0
        %p218 = scmp.lt.s32.totalorder %s24, 3
        %s219 = scalar_select %p218, %s24, 3
        %s220 = smul.addr %s217, 4
        %s221 = sadd.s32 %s219, %s220
        %s222 = smul.addr %s221, 4
        %s223 = scalar_lea.vmem %s0, %s222
        %p224 = pneg %p59
        %p225 = pneg %p56
        %s226 = sand.u32 %s74, 1
        %s227 = scalar_lea.sflag [#allocation3], %s226
        %s228 = sand.u32 %s74, 1
        %s229 = smul.addr %s228, 64
        %s230 = scalar_lea.vmem [#allocation2], %s229
        %p231 = pneg %p87
        %p232 = pneg %p84
        %p233 = scmp.lt.s32.totalorder %s23, 1
        %s234 = scalar_select %p233, %s23, 1
        %s235 = scalar_lea.vmem %s2, %s234
        %p236 = pneg %p113
        %p237 = pneg %p110
        %p238 = pneg %p141
        %p239 = pneg %p138
        %p240 = scmp.lt.s32.totalorder %s22, 0
        %s241 = scalar_select %p240, %s22, 0
        %p242 = scmp.lt.s32.totalorder %s23, 1
        %s243 = scalar_select %p242, %s23, 1
        %s244 = smul.addr %s241, 2
        %s245 = sadd.s32 %s243, %s244
        %s246 = smul.addr %s245, 8
        %s247 = scalar_lea.vmem %s3, %s246
        %p248 = scmp.lt.s32.totalorder %s22, 0
        %s249 = scalar_select %p248, %s22, 0
        %p250 = scmp.lt.s32.totalorder %s24, 3
        %s251 = scalar_select %p250, %s24, 3
        %s252 = smul.addr %s249, 4
        %s253 = sadd.s32 %s251, %s252
        %s254 = smul.addr %s253, 4
        %s255 = scalar_lea.vmem %s0, %s254
        %s256 = smul.u32 16, %s24
        %p257 = scmp.lt.s32.totalorder %s23, 1
        %s258 = scalar_select %p257, %s23, 1
        %s259 = scalar_lea.vmem %s2, %s258
        %p260 = scmp.lt.s32.totalorder %s22, 0
        %s261 = scalar_select %p260, %s22, 0
        %p262 = scmp.lt.s32.totalorder %s23, 1
        %s263 = scalar_select %p262, %s23, 1
        %s264 = smul.addr %s261, 2
        %s265 = sadd.s32 %s263, %s264
        %s266 = smul.addr %s265, 8
        %s267 = scalar_lea.vmem %s3, %s266
        %p269 = scmp.eq.s32.totalorder %s24, 0
        // Predicated region
        $region37: #{discriminator_forward.2} parent=31 // pred_check
          %p270 = pneg %p269
        $region38: #{discriminator_forward.2} parent=31 // pred_check_branch
          %272 = sbr.rel (%p270) target = $region40
        $region39: #{discriminator_forward.2} parent=31 // pred_region
          %273 = vst [vmem:[%s267] sm:$0xff] 0.0
        $region40: #{discriminator_forward.2} parent=31 // pred_fallthru
          _
        %v274 = vld [vmem:[%s267] sm:$0xff]
        %v275 = vld [vmem:[%s255] sm:$0xf]
        %v276 = vld [vmem:[%s211] sm:$0xf]
        %v277 = vld [vmem:[%s211 + $0x4] sm:$0xf]
        %v278 = vld [vmem:[%s211 + $0x8] sm:$0xf]
        %v279 = vld [vmem:[%s211 + $0xc] sm:$0xf]
        %v280 = vld [vmem:[%s211 + $0x10] sm:$0xf]
        %v281 = vld [vmem:[%s211 + $0x14] sm:$0xf]
        %v282 = vld [vmem:[%s211 + $0x18] sm:$0xf]
        %v283 = vld [vmem:[%s211 + $0x1c] sm:$0xf]
        %v284 = vld [vmem:[%s211 + $0x20] sm:$0xf]
        %v285 = vld [vmem:[%s211 + $0x24] sm:$0xf]
        %v286 = vld [vmem:[%s211 + $0x28] sm:$0xf]
        %v287 = vld [vmem:[%s211 + $0x2c] sm:$0xf]
        %v288 = vld [vmem:[%s211 + $0x30] sm:$0xf]
        %v289 = vld [vmem:[%s211 + $0x34] sm:$0xf]
        %v290 = vld [vmem:[%s211 + $0x38] sm:$0xf]
        %v291 = vld [vmem:[%s211 + $0x3c] sm:$0xf]
        %v308 = vunpack.c.l.b16 %v276
        %v309 = vunpack.c.l.b16 %v277
        %v310 = vunpack.c.l.b16 %v278
        %v311 = vunpack.c.l.b16 %v279
        %v312 = vunpack.c.l.b16 %v280
        %v313 = vunpack.c.l.b16 %v281
        %v314 = vunpack.c.l.b16 %v282
        %v315 = vunpack.c.l.b16 %v283
        %v316 = vunpack.c.l.b16 %v284
        %v317 = vunpack.c.l.b16 %v285
        %v318 = vunpack.c.l.b16 %v286
        %v319 = vunpack.c.l.b16 %v287
        %v320 = vunpack.c.l.b16 %v288
        %v321 = vunpack.c.l.b16 %v289
        %v322 = vunpack.c.l.b16 %v290
        %v323 = vunpack.c.l.b16 %v291
        %v324 = vpack.c.b16 %v309, %v308
        %v325 = vpack.c.b16 %v311, %v310
        %v326 = vpack.c.b16 %v313, %v312
        %v327 = vpack.c.b16 %v315, %v314
        %v328 = vpack.c.b16 %v317, %v316
        %v329 = vpack.c.b16 %v319, %v318
        %v330 = vpack.c.b16 %v321, %v320
        %v331 = vpack.c.b16 %v323, %v322
        %340 = vmatprep.subr.bf16.mxu0 0
        %341 = vmatpush1.bf16.msra.mxu0 %v324
        %342 = vmatprep.subr.bf16.mxu0 0
        %343 = vmatpush1.bf16.msra.mxu0 %v325
        %344 = vmatprep.subr.bf16.mxu0 0
        %345 = vmatpush1.bf16.msra.mxu0 %v326
        %346 = vmatprep.subr.bf16.mxu0 0
        %347 = vmatpush1.bf16.msra.mxu0 %v327
        %348 = vmatprep.subr.bf16.mxu0 0
        %349 = vmatpush1.bf16.msra.mxu0 %v328
        %350 = vmatprep.subr.bf16.mxu0 0
        %351 = vmatpush1.bf16.msra.mxu0 %v329
        %352 = vmatprep.subr.bf16.mxu0 0
        %353 = vmatpush1.bf16.msra.mxu0 %v330
        %354 = vmatprep.subr.bf16.mxu0 0
        %355 = vmatpush1.bf16.msra.mxu0 %v331
        %356 = vmatprep.subr.bf16.mxu0 0
        %357 = vmatpush1.bf16.msra.mxu0 0
        %358 = vmatprep.subr.bf16.mxu0 0
        %359 = vmatpush1.bf16.msra.mxu0 0
        %360 = vmatprep.subr.bf16.mxu0 0
        %361 = vmatpush1.bf16.msra.mxu0 0
        %362 = vmatprep.subr.bf16.mxu0 0
        %363 = vmatpush1.bf16.msra.mxu0 0
        %364 = vmatprep.subr.bf16.mxu0 0
        %365 = vmatpush1.bf16.msra.mxu0 0
        %366 = vmatprep.subr.bf16.mxu0 0
        %367 = vmatpush1.bf16.msra.mxu0 0
        %368 = vmatprep.subr.bf16.mxu0 0
        %369 = vmatpush1.bf16.msra.mxu0 0
        %370 = vmatprep.subr.bf16.mxu0 0
        %371 = vmatpush1.bf16.msra.mxu0 0
        %372 = vmatprep.mubr.bf16.mxu0 0
        %373 = vmatmul.mubr.bf16.gmra.mrb[0].mxu0 %v275
        %v374 = vpop.f32.mrb[0].mxu0
        %v375 = vadd.f32 0.0, %v374
        %v376 = vpop.f32.mrb[0].mxu0
        %v377 = vpop.f32.mrb[0].mxu0
        %v378 = vpop.f32.mrb[0].mxu0
        %379 = vdwg.mxu0
        %v380 = vadd.f32 %v274, %v375
        %381 = vst [vmem:[%s267] sm:$0xff] %v380
        %p382 = scmp.eq.s32.totalorder %s24, 3
        // Predicated region
        $region41: #{discriminator_forward.2} parent=31 // pred_check
          %p383 = pneg %p382
        $region42: #{discriminator_forward.2} parent=31 // pred_check_branch
          %385 = sbr.rel (%p383) target = $region44
        $region43: #{discriminator_forward.2} parent=31 // pred_region
          %v386 = vld [vmem:[%s267] sm:$0xff]
          %v387 = vld [vmem:[%s259] sm:$0x1]
          %v389 = vlaneseq
          %v390 = vshrl.u32 %v389, 7
          %v391 = vsub.s32 0, %v390
          %v392 = vrot.slane %v387, %v391
          %v394 = vadd.f32 %v386, %v392
          %vm395 = vcmp.gt.f32.partialorder %v394, 0.0
          %v396 = vmul.f32 %v394, 0.2
          %v397 = vsel %vm395, %v394, %v396
          %398 = vst [vmem:[%s267] sm:$0xff] %v397
        $region44: #{discriminator_forward.2} parent=31 // pred_fallthru
          _
        %p399 = scmp.lt.s32.totalorder %s22, 0
        %s400 = scalar_select %p399, %s22, 0
        %p401 = scmp.lt.s32.totalorder %s23, 1
        %s402 = scalar_select %p401, %s23, 1
        %s403 = smul.addr %s400, 2
        %s404 = sadd.s32 %s402, %s403
        %s405 = smul.addr %s404, 8
        %s406 = scalar_lea.vmem %s3, %s405
        // Predicated region
        $region45: #{discriminator_forward.2} parent=31 // pred_check
          %p407 = pneg %p138
        $region46: #{discriminator_forward.2} parent=31 // pred_check_branch
          %409 = sbr.rel (%p407) target = $region48
        $region47: #{discriminator_forward.2} parent=31 // pred_region
          _
        $region48: #{discriminator_forward.2} parent=31 // pred_fallthru
          _
      $region32: #{discriminator_forward.2} parent=5 // pred_fallthru
        _
      %p410 = scmp.le.s32.totalorder 2, %s12
      // Predicated region
      $region49: #{discriminator_forward.2} parent=5 // pred_check
        %p411 = pneg %p410
      $region50: #{discriminator_forward.2} parent=5 // pred_check_branch
        %413 = sbr.rel (%p411) target = $region52
      $region51: #{discriminator_forward.2} parent=5 // pred_region
        %s414 = ssub.s32 %s12, 2
        // Predicated region
        $region53: #{discriminator_forward.2} parent=51 // pred_check
          %p415 = pneg %p144
        $region54: #{discriminator_forward.2} parent=51 // pred_check_branch
          %417 = sbr.rel (%p415) target = $region56
        $region55: #{discriminator_forward.2} parent=51 // pred_region
          %p418 = scmp.lt.s32.totalorder %s25, 0
          %s419 = scalar_select %p418, %s25, 0
          %p420 = scmp.lt.s32.totalorder %s26, 1
          %s421 = scalar_select %p420, %s26, 1
          %s422 = smul.addr %s419, 2
          %s423 = sadd.s32 %s421, %s422
          %s424 = smul.addr %s423, 8
          %s425 = scalar_lea.vmem %s3, %s424
        $region56: #{discriminator_forward.2} parent=51 // pred_fallthru
          _
      $region52: #{discriminator_forward.2} parent=5 // pred_fallthru
        _
    $region6: #{discriminator_forward.2} parent=1 // loop_footer
      %s16 = sadd.s32 1, %s12
    $region7: #{discriminator_forward.2} parent=1 // loop_footer_branch
      %11 = sbr.rel target = $region3
    $region8: #{discriminator_forward.2} parent=1 // loop_exit
      _
    %426 = vsyncpa [#allocation3], 1
    %s427 = scalar_lea.sflag [#allocation3], 1
    %428 = vsyncpa %s427, 1

// kernel: discriminator_forward.3
$region0: #{discriminator_forward.3}
  #allocation0 [shape = 'u32[]', space=smem, size = 0x4, offset = 0x4, fixed_abs, tag = 'smem constant byte address 0x4 - core index']
  #allocation1 [shape = 'u32[144,128]{1,0:T(1,128)}', space=vmem, size = 0x12000, scoped, tag = 'internal scratch']
  #allocation2 [shape = 'f32[1,1]{1,0:T(1,128)S(6)}', space=smem, size = 0x200, scoped, tag = 'scoped memory for discriminator_forward.3']
  %s0 = inlined_call_operand.vmem [shape: f32[8,256], index: 0, kind: input, shape index: {}]
  %s1 = inlined_call_operand.vmem [shape: bf16[256,128], index: 1, kind: input, shape index: {}]
  %s2 = inlined_call_operand.vmem [shape: f32[1,128], index: 2, kind: input, shape index: {}]
  %s3 = inlined_call_operand.vmem [shape: bf16[128,64], index: 3, kind: input, shape index: {}]
  %s4 = inlined_call_operand.vmem [shape: f32[1,64], index: 4, kind: input, shape index: {}]
  %s5 = inlined_call_operand.vmem [shape: bf16[1,64], index: 5, kind: input, shape index: {}]
  %s6 = inlined_call_operand.<no memory space> [shape: f32[1,1], index: 6, kind: input, shape index: {}]
  %s7 = inlined_call_operand.vmem [shape: f32[8,128], index: 7, kind: output, shape index: {}]
  %s8 = sld [smem:[#allocation0]]
  $region38: #{discriminator_forward.3} parent=0
    _
  %s10 = ssub.s32 1, %s8
  %s11 = scalar_select 0, %s10, %s8
  %12 = sst [smem:[#allocation2]] %s6
  // Predicated region
  $region2: #{discriminator_forward.3} parent=0 // pred_check
    _
  $region3: #{discriminator_forward.3} parent=0 // pred_check_branch
    %14 = sbr.rel (0) target = $region5
  $region4: #{discriminator_forward.3} parent=0 // pred_region
    _
  $region5: #{discriminator_forward.3} parent=0 // pred_fallthru
    _
  // Predicated region
  $region6: #{discriminator_forward.3} parent=0 // pred_check
    _
  $region7: #{discriminator_forward.3} parent=0 // pred_check_branch
    %16 = sbr.rel (0) target = $region9
  $region8: #{discriminator_forward.3} parent=0 // pred_region
    _
  $region9: #{discriminator_forward.3} parent=0 // pred_fallthru
    _
  // Predicated region
  $region10: #{discriminator_forward.3} parent=0 // pred_check
    _
  $region11: #{discriminator_forward.3} parent=0 // pred_check_branch
    %18 = sbr.rel (0) target = $region13
  $region12: #{discriminator_forward.3} parent=0 // pred_region
    _
  $region13: #{discriminator_forward.3} parent=0 // pred_fallthru
    _
  // Predicated region
  $region14: #{discriminator_forward.3} parent=0 // pred_check
    _
  $region15: #{discriminator_forward.3} parent=0 // pred_check_branch
    %20 = sbr.rel (0) target = $region17
  $region16: #{discriminator_forward.3} parent=0 // pred_region
    _
  $region17: #{discriminator_forward.3} parent=0 // pred_fallthru
    _
  // Predicated region
  $region18: #{discriminator_forward.3} parent=0 // pred_check
    _
  $region19: #{discriminator_forward.3} parent=0 // pred_check_branch
    %22 = sbr.rel (0) target = $region21
  $region20: #{discriminator_forward.3} parent=0 // pred_region
    _
  $region21: #{discriminator_forward.3} parent=0 // pred_fallthru
    _
  // Predicated region
  $region22: #{discriminator_forward.3} parent=0 // pred_check
    _
  $region23: #{discriminator_forward.3} parent=0 // pred_check_branch
    %24 = sbr.rel (0) target = $region25
  $region24: #{discriminator_forward.3} parent=0 // pred_region
    _
  $region25: #{discriminator_forward.3} parent=0 // pred_fallthru
    _
  // Predicated region
  $region26: #{discriminator_forward.3} parent=0 // pred_check
    _
  $region27: #{discriminator_forward.3} parent=0 // pred_check_branch
    %26 = sbr.rel (0) target = $region29
  $region28: #{discriminator_forward.3} parent=0 // pred_region
    _
  $region29: #{discriminator_forward.3} parent=0 // pred_fallthru
    _
  %v28 = vld [vmem:[%s0] sm:$0xff]
  %v29 = vld [vmem:[%s0 + $0x8] sm:$0xff]
  %v30 = vpack.c.bf16 %v28, %v28
  %v31 = vpack.c.bf16 %v29, %v29
  %v32 = vld [vmem:[%s1] sm:$0xf]
  %v33 = vld [vmem:[%s1 + $0x4] sm:$0xf]
  %v34 = vld [vmem:[%s1 + $0x8] sm:$0xf]
  %v35 = vld [vmem:[%s1 + $0xc] sm:$0xf]
  %v36 = vld [vmem:[%s1 + $0x10] sm:$0xf]
  %v37 = vld [vmem:[%s1 + $0x14] sm:$0xf]
  %v38 = vld [vmem:[%s1 + $0x18] sm:$0xf]
  %v39 = vld [vmem:[%s1 + $0x1c] sm:$0xf]
  %v40 = vld [vmem:[%s1 + $0x20] sm:$0xf]
  %v41 = vld [vmem:[%s1 + $0x24] sm:$0xf]
  %v42 = vld [vmem:[%s1 + $0x28] sm:$0xf]
  %v43 = vld [vmem:[%s1 + $0x2c] sm:$0xf]
  %v44 = vld [vmem:[%s1 + $0x30] sm:$0xf]
  %v45 = vld [vmem:[%s1 + $0x34] sm:$0xf]
  %v46 = vld [vmem:[%s1 + $0x38] sm:$0xf]
  %v47 = vld [vmem:[%s1 + $0x3c] sm:$0xf]
  %v48 = vld [vmem:[%s1 + $0x40] sm:$0xf]
  %v49 = vld [vmem:[%s1 + $0x44] sm:$0xf]
  %v50 = vld [vmem:[%s1 + $0x48] sm:$0xf]
  %v51 = vld [vmem:[%s1 + $0x4c] sm:$0xf]
  %v52 = vld [vmem:[%s1 + $0x50] sm:$0xf]
  %v53 = vld [vmem:[%s1 + $0x54] sm:$0xf]
  %v54 = vld [vmem:[%s1 + $0x58] sm:$0xf]
  %v55 = vld [vmem:[%s1 + $0x5c] sm:$0xf]
  %v56 = vld [vmem:[%s1 + $0x60] sm:$0xf]
  %v57 = vld [vmem:[%s1 + $0x64] sm:$0xf]
  %v58 = vld [vmem:[%s1 + $0x68] sm:$0xf]
  %v59 = vld [vmem:[%s1 + $0x6c] sm:$0xf]
  %v60 = vld [vmem:[%s1 + $0x70] sm:$0xf]
  %v61 = vld [vmem:[%s1 + $0x74] sm:$0xf]
  %v62 = vld [vmem:[%s1 + $0x78] sm:$0xf]
  %v63 = vld [vmem:[%s1 + $0x7c] sm:$0xf]
  %v64 = vld [vmem:[%s2] sm:$0x1]
  %v66 = vlaneseq
  %v67 = vshrl.u32 %v66, 7
  %v68 = vsub.s32 0, %v67
  %v69 = vrot.slane %v64, %v68
  %v103 = vunpack.c.l.b16 %v32
  %v104 = vunpack.c.l.b16 %v33
  %v105 = vunpack.c.l.b16 %v34
  %v106 = vunpack.c.l.b16 %v35
  %v107 = vunpack.c.l.b16 %v36
  %v108 = vunpack.c.l.b16 %v37
  %v109 = vunpack.c.l.b16 %v38
  %v110 = vunpack.c.l.b16 %v39
  %v111 = vunpack.c.l.b16 %v40
  %v112 = vunpack.c.l.b16 %v41
  %v113 = vunpack.c.l.b16 %v42
  %v114 = vunpack.c.l.b16 %v43
  %v115 = vunpack.c.l.b16 %v44
  %v116 = vunpack.c.l.b16 %v45
  %v117 = vunpack.c.l.b16 %v46
  %v118 = vunpack.c.l.b16 %v47
  %v119 = vunpack.c.l.b16 %v48
  %v120 = vunpack.c.l.b16 %v49
  %v121 = vunpack.c.l.b16 %v50
  %v122 = vunpack.c.l.b16 %v51
  %v123 = vunpack.c.l.b16 %v52
  %v124 = vunpack.c.l.b16 %v53
  %v125 = vunpack.c.l.b16 %v54
  %v126 = vunpack.c.l.b16 %v55
  %v127 = vunpack.c.l.b16 %v56
  %v128 = vunpack.c.l.b16 %v57
  %v129 = vunpack.c.l.b16 %v58
  %v130 = vunpack.c.l.b16 %v59
  %v131 = vunpack.c.l.b16 %v60
  %v132 = vunpack.c.l.b16 %v61
  %v133 = vunpack.c.l.b16 %v62
  %v134 = vunpack.c.l.b16 %v63
  %v135 = vpack.c.b16 %v104, %v103
  %v136 = vpack.c.b16 %v106, %v105
  %v137 = vpack.c.b16 %v108, %v107
  %v138 = vpack.c.b16 %v110, %v109
  %v139 = vpack.c.b16 %v112, %v111
  %v140 = vpack.c.b16 %v114, %v113
  %v141 = vpack.c.b16 %v116, %v115
  %v142 = vpack.c.b16 %v118, %v117
  %v143 = vpack.c.b16 %v120, %v119
  %v144 = vpack.c.b16 %v122, %v121
  %v145 = vpack.c.b16 %v124, %v123
  %v146 = vpack.c.b16 %v126, %v125
  %v147 = vpack.c.b16 %v128, %v127
  %v148 = vpack.c.b16 %v130, %v129
  %v149 = vpack.c.b16 %v132, %v131
  %v150 = vpack.c.b16 %v134, %v133
  %167 = vmatprep.subr.bf16.mxu0 0
  %168 = vmatpush1.bf16.msra.mxu0 %v135
  %169 = vmatprep.subr.bf16.mxu0 0
  %170 = vmatpush1.bf16.msra.mxu0 %v136
  %171 = vmatprep.subr.bf16.mxu0 0
  %172 = vmatpush1.bf16.msra.mxu0 %v137
  %173 = vmatprep.subr.bf16.mxu0 0
  %174 = vmatpush1.bf16.msra.mxu0 %v138
  %175 = vmatprep.subr.bf16.mxu0 0
  %176 = vmatpush1.bf16.msra.mxu0 %v139
  %177 = vmatprep.subr.bf16.mxu0 0
  %178 = vmatpush1.bf16.msra.mxu0 %v140
  %179 = vmatprep.subr.bf16.mxu0 0
  %180 = vmatpush1.bf16.msra.mxu0 %v141
  %181 = vmatprep.subr.bf16.mxu0 0
  %182 = vmatpush1.bf16.msra.mxu0 %v142
  %183 = vmatprep.subr.bf16.mxu0 0
  %184 = vmatpush1.bf16.msra.mxu0 %v143
  %185 = vmatprep.subr.bf16.mxu0 0
  %186 = vmatpush1.bf16.msra.mxu0 %v144
  %187 = vmatprep.subr.bf16.mxu0 0
  %188 = vmatpush1.bf16.msra.mxu0 %v145
  %189 = vmatprep.subr.bf16.mxu0 0
  %190 = vmatpush1.bf16.msra.mxu0 %v146
  %191 = vmatprep.subr.bf16.mxu0 0
  %192 = vmatpush1.bf16.msra.mxu0 %v147
  %193 = vmatprep.subr.bf16.mxu0 0
  %194 = vmatpush1.bf16.msra.mxu0 %v148
  %195 = vmatprep.subr.bf16.mxu0 0
  %196 = vmatpush1.bf16.msra.mxu0 %v149
  %197 = vmatprep.subr.bf16.mxu0 0
  %198 = vmatpush1.bf16.msra.mxu0 %v150
  %199 = vmatprep.mubr.bf16.mxu0 %v31
  %200 = vmatmul.mubr.bf16.gmra.mrb[0].mxu0 %v30
  %v201 = vpop.f32.mrb[0].mxu0
  %v202 = vadd.f32 %v69, %v201
  %v203 = vpop.f32.mrb[0].mxu0
  %v204 = vpop.f32.mrb[0].mxu0
  %v205 = vpop.f32.mrb[0].mxu0
  %206 = vdwg.mxu0
  %vm207 = vcmp.gt.f32.partialorder %v202, 0.0
  %v208 = vmul.f32 %v202, 0.2
  %v209 = vsel %vm207, %v202, %v208
  %v210 = vpack.c.bf16 %v209, %v209
  %v211 = vld [vmem:[%s3] sm:$0xf]
  %v212 = vld [vmem:[%s3 + $0x4] sm:$0xf]
  %v213 = vld [vmem:[%s3 + $0x8] sm:$0xf]
  %v214 = vld [vmem:[%s3 + $0xc] sm:$0xf]
  %v215 = vld [vmem:[%s3 + $0x10] sm:$0xf]
  %v216 = vld [vmem:[%s3 + $0x14] sm:$0xf]
  %v217 = vld [vmem:[%s3 + $0x18] sm:$0xf]
  %v218 = vld [vmem:[%s3 + $0x1c] sm:$0xf]
  %v219 = vld [vmem:[%s3 + $0x20] sm:$0xf]
  %v220 = vld [vmem:[%s3 + $0x24] sm:$0xf]
  %v221 = vld [vmem:[%s3 + $0x28] sm:$0xf]
  %v222 = vld [vmem:[%s3 + $0x2c] sm:$0xf]
  %v223 = vld [vmem:[%s3 + $0x30] sm:$0xf]
  %v224 = vld [vmem:[%s3 + $0x34] sm:$0xf]
  %v225 = vld [vmem:[%s3 + $0x38] sm:$0xf]
  %v226 = vld [vmem:[%s3 + $0x3c] sm:$0xf]
  %v227 = vld [vmem:[%s4] sm:$0x1]
  %v229 = vlaneseq
  %v230 = vshrl.u32 %v229, 7
  %v231 = vsub.s32 0, %v230
  %v232 = vrot.slane %v227, %v231
  %v250 = vunpack.c.l.b16 %v211
  %v251 = vunpack.c.l.b16 %v212
  %v252 = vunpack.c.l.b16 %v213
  %v253 = vunpack.c.l.b16 %v214
  %v254 = vunpack.c.l.b16 %v215
  %v255 = vunpack.c.l.b16 %v216
  %v256 = vunpack.c.l.b16 %v217
  %v257 = vunpack.c.l.b16 %v218
  %v258 = vunpack.c.l.b16 %v219
  %v259 = vunpack.c.l.b16 %v220
  %v260 = vunpack.c.l.b16 %v221
  %v261 = vunpack.c.l.b16 %v222
  %v262 = vunpack.c.l.b16 %v223
  %v263 = vunpack.c.l.b16 %v224
  %v264 = vunpack.c.l.b16 %v225
  %v265 = vunpack.c.l.b16 %v226
  %v266 = vpack.c.b16 %v251, %v250
  %v267 = vpack.c.b16 %v253, %v252
  %v268 = vpack.c.b16 %v255, %v254
  %v269 = vpack.c.b16 %v257, %v256
  %v270 = vpack.c.b16 %v259, %v258
  %v271 = vpack.c.b16 %v261, %v260
  %v272 = vpack.c.b16 %v263, %v262
  %v273 = vpack.c.b16 %v265, %v264
  %282 = vmatprep.subr.bf16.mxu0 0
  %283 = vmatpush1.bf16.msra.mxu0 %v266
  %284 = vmatprep.subr.bf16.mxu0 0
  %285 = vmatpush1.bf16.msra.mxu0 %v267
  %286 = vmatprep.subr.bf16.mxu0 0
  %287 = vmatpush1.bf16.msra.mxu0 %v268
  %288 = vmatprep.subr.bf16.mxu0 0
  %289 = vmatpush1.bf16.msra.mxu0 %v269
  %290 = vmatprep.subr.bf16.mxu0 0
  %291 = vmatpush1.bf16.msra.mxu0 %v270
  %292 = vmatprep.subr.bf16.mxu0 0
  %293 = vmatpush1.bf16.msra.mxu0 %v271
  %294 = vmatprep.subr.bf16.mxu0 0
  %295 = vmatpush1.bf16.msra.mxu0 %v272
  %296 = vmatprep.subr.bf16.mxu0 0
  %297 = vmatpush1.bf16.msra.mxu0 %v273
  %298 = vmatprep.subr.bf16.mxu0 0
  %299 = vmatpush1.bf16.msra.mxu0 0
  %300 = vmatprep.subr.bf16.mxu0 0
  %301 = vmatpush1.bf16.msra.mxu0 0
  %302 = vmatprep.subr.bf16.mxu0 0
  %303 = vmatpush1.bf16.msra.mxu0 0
  %304 = vmatprep.subr.bf16.mxu0 0
  %305 = vmatpush1.bf16.msra.mxu0 0
  %306 = vmatprep.subr.bf16.mxu0 0
  %307 = vmatpush1.bf16.msra.mxu0 0
  %308 = vmatprep.subr.bf16.mxu0 0
  %309 = vmatpush1.bf16.msra.mxu0 0
  %310 = vmatprep.subr.bf16.mxu0 0
  %311 = vmatpush1.bf16.msra.mxu0 0
  %312 = vmatprep.subr.bf16.mxu0 0
  %313 = vmatpush1.bf16.msra.mxu0 0
  %314 = vmatprep.mubr.bf16.mxu0 0
  %315 = vmatmul.mubr.bf16.gmra.mrb[0].mxu0 %v210
  %v316 = vpop.f32.mrb[0].mxu0
  %v317 = vadd.f32 %v232, %v316
  %v318 = vpop.f32.mrb[0].mxu0
  %v319 = vpop.f32.mrb[0].mxu0
  %v320 = vpop.f32.mrb[0].mxu0
  %321 = vdwg.mxu0
  %vm322 = vcmp.gt.f32.partialorder %v317, 0.0
  %v323 = vmul.f32 %v317, 0.2
  %v324 = vsel %vm322, %v317, %v323
  %v325 = vld [vmem:[%s5] sm:$0x1]
  %v326 = vunpack.c.l.bf16 %v325
  %v327 = vlaneseq
  %v328 = vshrl.u32 %v327, 7
  %v329 = vsub.s32 0, %v328
  %v330 = vrot.slane %v326, %v329
  %v331 = vmul.f32 %v324, %v330
  %vm332 = vcmask 523264
  %v333 = vsel %vm332, %v331, 0.0
  %334 = vadd.xlane.f32.xlu0 %v333
  %v335 = vpop.xlane.xlu0 %334
  %s336 = sld [smem:[#allocation2]]
  %v337 = vstv %s336
  %v338 = vadd.f32 %v335, %v337
  %339 = vst [vmem:[%s7] sm:$0xff] %v338
  // Predicated region
  $region30: #{discriminator_forward.3} parent=0 // pred_check
    _
  $region31: #{discriminator_forward.3} parent=0 // pred_check_branch
    %341 = sbr.rel (0) target = $region33
  $region32: #{discriminator_forward.3} parent=0 // pred_region
    _
  $region33: #{discriminator_forward.3} parent=0 // pred_fallthru
    _
  // Predicated region
  $region34: #{discriminator_forward.3} parent=0 // pred_check
    _
  $region35: #{discriminator_forward.3} parent=0 // pred_check_branch
    %343 = sbr.rel (0) target = $region37
  $region36: #{discriminator_forward.3} parent=0 // pred_region
    _
  $region37: #{discriminator_forward.3} parent=0 // pred_fallthru
    _

</llo_original>
